<compile_context>
chip_gen: v6e
topology: v6e:2x2x1
jax: 0.10.0
libtpu: 0.0.40
codegen_flags: <defaults>
</compile_context>

<pallas_src>
import jax
import jax.numpy as jnp
from jax.experimental import pallas as pl
from jax.experimental.pallas import tpu as pltpu


def _identity_kernel(x_ref, o_ref):
    # Pure copy of the current (tile_rows, cols) VMEM tile.
    o_ref[...] = x_ref[...]


def _lane_dense_layout(total):
    """Return (rows, cols, pad_elems) with cols a multiple of 128.

    Prefers wider (more lane-dense) cols when the element count divides
    evenly; otherwise pads the flattened array up to a multiple of 128 so
    stores are always full-width vst (never masked partial stores)."""
    for cols in (1024, 512, 256, 128):
        if total % cols == 0:
            return total // cols, cols, 0
    cols = 128
    padded = ((total + cols - 1) // cols) * cols
    return padded // cols, cols, padded - total


def _pick_tile_rows(rows, cols, itemsize, target_bytes=4 * 1024 * 1024):
    """Row-tile size for the copy kernel.

    Rules (per review):
      * rows <= 8: use the full row extent (full array dims always satisfy
        the (8,128) block rule).
      * otherwise: tile = min(rows, ~4 MiB budget) rounded down to a
        multiple of 32 (keeps bf16/int8 loads vreg-dense); the last grid
        step may be ragged — pl.cdiv + Pallas OOB masking handle it.  No
        divisor search, no whole-array fallback.
      * force >= 2 grid steps when possible so the 'parallel' axis shards
        across both v7x TensorCores."""
    if rows <= 8:
        return rows
    budget_rows = max(8, target_bytes // (cols * itemsize))
    tile = min(rows, budget_rows)
    if tile >= 32:
        tile = tile // 32 * 32
    else:
        tile = max(8, tile // 8 * 8)
    if pl.cdiv(rows, tile) < 2 and rows >= 16:
        tile = max(8, (((rows + 1) // 2) + 7) // 8 * 8)
    return tile


def _pallas_identity(x):
    """Identity implemented as a tiled lane-dense Pallas copy kernel."""
    orig_shape = x.shape
    total = x.size
    if total == 0:
        return x

    rows, cols, pad = _lane_dense_layout(total)
    flat = x.reshape(-1)
    if pad:
        flat = jnp.pad(flat, (0, pad))
    x2d = flat.reshape(rows, cols)

    tile_rows = _pick_tile_rows(rows, cols, x.dtype.itemsize)
    grid = (pl.cdiv(rows, tile_rows),)

    out2d = pl.pallas_call(
        _identity_kernel,
        out_shape=jax.ShapeDtypeStruct((rows, cols), x2d.dtype),
        grid_spec=pltpu.PrefetchScalarGridSpec(
            num_scalar_prefetch=0,
            grid=grid,
            in_specs=[pl.BlockSpec((tile_rows, cols), lambda i: (i, 0))],
            out_specs=pl.BlockSpec((tile_rows, cols), lambda i: (i, 0)),
        ),
        compiler_params=pltpu.CompilerParams(
            dimension_semantics=("parallel",),
            # Explicit 32 MiB: v5e's scoped default is only 16 MiB, which
            # 4 MiB tiles x 4 double-buffers would exceed.
            vmem_limit_bytes=32 * 1024 * 1024,
        ),
        # NOTE: no input_output_aliases — it only actually aliases when the
        # input is donated (jit donate_argnums) or is an intermediate.
    )(x2d)

    out = out2d.reshape(-1)
    if pad:
        out = out[:total]
    return out.reshape(orig_shape)


def print_layer(x, *, use_pallas_copy=False):
    """Pallas implementation of PrintLayer.forward: print(x); return x.

    Default path is a pure host print + `return x` (zero HBM traffic, the
    op is a device-side no-op).  `use_pallas_copy=True` routes the return
    value through the tiled Pallas identity kernel (verification / API use).

    NOTE: the host `print(x)` reproduces PyTorch's eager print; under
    jax.jit it would show a tracer at trace time only — use jax.debug.print
    there for per-call value printing.
    """
    print(x)
    if not use_pallas_copy:
        return x
    return _pallas_identity(x)


if __name__ == "__main__":
    key = jax.random.PRNGKey(0)
    # Small NCHW input consistent with a conv-style model input.
    x = jax.random.normal(key, (2, 4, 16, 16), dtype=jnp.float32)

    # Default (recommended) path: identity, no device kernel launched.
    y_fast = print_layer(x)

    # Pallas copy path: exercises the kernel once on TPU.
    y_kern = print_layer(x, use_pallas_copy=True)
    y_kern = jax.block_until_ready(y_kern)

    # Also exercise the padded (non-128-divisible) layout path.
    x_odd = jax.random.normal(jax.random.PRNGKey(1), (3, 5, 7), dtype=jnp.float32)
    y_odd = jax.block_until_ready(_pallas_identity(x_odd))

    assert y_fast.shape == x.shape and y_fast.dtype == x.dtype
    assert y_kern.shape == x.shape and y_kern.dtype == x.dtype
    assert bool(jnp.all(y_fast == x))
    assert bool(jnp.all(y_kern == x))
    assert y_odd.shape == x_odd.shape and bool(jnp.all(y_odd == x_odd))
    print("KERNEL_OK")
</pallas_src>

<mosaic_0001>
module attributes {stable_mosaic.version = 11 : i64} {
  func.func @_identity_kernel(%arg0: i32, %arg1: memref<2x1024xf32, #tpu.memory_space<vmem>>, %arg2: memref<2x1024xf32, #tpu.memory_space<vmem>>) attributes {dimension_semantics = [#tpu.dimension_semantics<parallel>], iteration_bounds = array<i64: 1>, scalar_prefetch = 0 : i64, scratch_operands = 0 : i64, tpu.core_type = #tpu.core_type<tc>, window_params = [{transform_indices = @transform_0, window_bounds = array<i64: 2, 1024>}, {transform_indices = @transform_1, window_bounds = array<i64: 2, 1024>}]} {
    %c0 = arith.constant 0 : index
    %c0_0 = arith.constant 0 : index
    %0 = vector.load %arg1[%c0, %c0_0] : memref<2x1024xf32, #tpu.memory_space<vmem>>, vector<2x1024xf32>
    %c0_1 = arith.constant 0 : index
    %c0_2 = arith.constant 0 : index
    %1 = vector.load %arg2[%c0_1, %c0_2] : memref<2x1024xf32, #tpu.memory_space<vmem>>, vector<2x1024xf32>
    tpu.vector_store %arg2[%c0_1, %c0_2], %0 {strides = array<i32>} : memref<2x1024xf32, #tpu.memory_space<vmem>>, vector<2x1024xf32>,
    return
  }
  func.func @transform_0(%arg0: i32) -> (i32, i32) {
    %c0_i32 = arith.constant 0 : i32
    %c0_i32_0 = arith.constant 0 : i32
    return %arg0, %c0_i32 : i32, i32
  }
  func.func @transform_1(%arg0: i32) -> (i32, i32) {
    %c0_i32 = arith.constant 0 : i32
    %c0_i32_0 = arith.constant 0 : i32
    return %arg0, %c0_i32 : i32, i32
  }
}

</mosaic_0001>

<llo_original>
// kernel: tpu_custom_call.1
$region0: #{tpu_custom_call.1}
  #allocation0 [shape = 'u32[]', space=smem, size = 0x4, offset = 0x4, fixed_abs, tag = 'smem constant byte address 0x4 - core index']
  #allocation1 [shape = 'u32[144,128]{1,0:T(1,128)}', space=vmem, size = 0x12000, scoped, tag = 'internal scratch']
  %s0 = inlined_call_operand.hbm [shape: f32[2,1024], index: 0, kind: input, shape index: {}]
  %s1 = inlined_call_operand.hbm [shape: f32[2,1024], index: 1, kind: output, shape index: {}]
  %s2 = sld [smem:[#allocation0]]
  $region18: #{tpu_custom_call.1} parent=0
    _
  %s4 = ssub.s32 1, %s2
  %s5 = scalar_select 0, %s4, %s2
  $region1: #{tpu_custom_call.1} parent=0
    #allocation2 [shape = 'u8[8192]{0}', space=vmem, size = 0x2000, scoped, tag = 'input window, operand 0, single buffered']
    #allocation3 [shape = 's32[1]{0}', space=sflag, size = 0x4, scoped, tag = 'scoped memory for tpu_custom_call.1']
    #allocation4 [shape = 's32[1]{0}', space=sflag, size = 0x4, scoped, tag = 'scoped memory for tpu_custom_call.1']
    #allocation5 [shape = 'u8[8192]{0}', space=vmem, size = 0x2000, scoped, tag = 'output window, operand 0, single buffered']
    %6 = vsyncpa [#allocation3], 0
    %7 = vsyncpa [#allocation4], 0
    // Predicated region
    $region2: #{tpu_custom_call.1} parent=1 // pred_check
      _
    $region3: #{tpu_custom_call.1} parent=1 // pred_check_branch
      %9 = sbr.rel (0) target = $region5
    $region4: #{tpu_custom_call.1} parent=1 // pred_region
      %s11 = ssub.s32 256, 256
      %12 = vsyncadd [#allocation3], %s11
      %s14 = sshll.u32 [#allocation2], 4
      %s15 = int_to_ptr.vmem [resolvable:$true] %s14
      %17 = dma.hbm_to_vmem [thread:$0]  %s0, 256, %s15, [#allocation3]
    $region5: #{tpu_custom_call.1} parent=1 // pred_fallthru
      _
    // Predicated region
    $region6: #{tpu_custom_call.1} parent=1 // pred_check
      _
    $region7: #{tpu_custom_call.1} parent=1 // pred_check_branch
      %19 = sbr.rel (0) target = $region9
    $region8: #{tpu_custom_call.1} parent=1 // pred_region
      %20 = dma.done [#allocation3], 256
    $region9: #{tpu_custom_call.1} parent=1 // pred_fallthru
      _
    %v21 = vld [vmem:[#allocation2] sm:$0xff]
    %v22 = vld [vmem:[#allocation2 + $0x8] sm:$0xff]
    %23 = vst [vmem:[#allocation5] sm:$0xff] %v21
    %24 = vst [vmem:[#allocation5 + $0x8] sm:$0xff] %v22
    // Predicated region
    $region10: #{tpu_custom_call.1} parent=1 // pred_check
      _
    $region11: #{tpu_custom_call.1} parent=1 // pred_check_branch
      %26 = sbr.rel (0) target = $region13
    $region12: #{tpu_custom_call.1} parent=1 // pred_region
      %s28 = ssub.s32 256, 256
      %29 = vsyncadd [#allocation4], %s28
      %s31 = sshll.u32 [#allocation5], 4
      %s32 = int_to_ptr.vmem [resolvable:$true] %s31
      %34 = dma.vmem_to_hbm [thread:$0]  %s32, 256, %s1, [#allocation4]
    $region13: #{tpu_custom_call.1} parent=1 // pred_fallthru
      _
    // Predicated region
    $region14: #{tpu_custom_call.1} parent=1 // pred_check
      _
    $region15: #{tpu_custom_call.1} parent=1 // pred_check_branch
      %36 = sbr.rel (0) target = $region17
    $region16: #{tpu_custom_call.1} parent=1 // pred_region
      %37 = dma.done [#allocation4], 256
    $region17: #{tpu_custom_call.1} parent=1 // pred_fallthru
      _
    %38 = vsyncpa [#allocation3], 1
    %39 = vsyncpa [#allocation4], 1

</llo_original>
